<compile_context>
chip_gen: v6e
topology: v6e:2x2x1
jax: 0.10.0
libtpu: 0.0.40
codegen_flags: <defaults>
</compile_context>

<pallas_src>
import functools

import jax
import jax.numpy as jnp
from jax.experimental import pallas as pl
from jax.experimental.pallas import tpu as pltpu

C = 16  # fixed by nn.Linear(16, 16) in the module


def _layernorm_c(y, gamma, beta, eps=1e-5):
    """LayerNorm over the channel axis (axis=1) of (TB, C, S); gamma/beta (C,1)."""
    mu = jnp.mean(y, axis=1, keepdims=True)
    var = jnp.mean(jnp.square(y - mu), axis=1, keepdims=True)
    return (y - mu) * jax.lax.rsqrt(var + eps) * gamma + beta


def _batched_wx(w_b, x):
    """w_b: (TB, n, C) resident broadcast weights; x: (TB, C, S) -> (TB, n, S).

    y[b, o, s] = sum_c w[o, c] * x[b, c, s]  (PyTorch Linear over channels)."""
    return jax.lax.dot_general(
        w_b, x,
        dimension_numbers=(((2,), (1,)), ((0,), (0,))),
        preferred_element_type=jnp.float32)


def channel_attention_kernel(
    x_ref, w_ref, vec_ref, pool_ref, o_ref,
    *, inter, extract_seq, skip_attn,
):
    x = x_ref[...]                       # (TB, C, S) f32
    wb = w_ref[...]                      # (TB, 48, C) or (TB, 16, C) resident
    vecs = vec_ref[...]                  # (C, 9): bq gq betq bk gk betk bp gp betp

    bp, gp, betp = vecs[:, 6:7], vecs[:, 7:8], vecs[:, 8:9]

    if skip_attn:
        # softmax rows sum to 1 -> einsum('bocs,bocm->bocs', x, score) == x.
        out_cs = x
        wp_b = wb                                               # (TB, C, C)
    else:
        bq, gq, betq = vecs[:, 0:1], vecs[:, 1:2], vecs[:, 2:3]
        bk, gk, betk = vecs[:, 3:4], vecs[:, 4:5], vecs[:, 5:6]
        wp_b = wb[:, 2 * C:, :]                                 # (TB, C, C)

        # query + key with ONE fused batched matmul (stacked 32-row weight).
        qk = _batched_wx(wb[:, :2 * C, :], x)                   # (TB, 32, S)
        q = _layernorm_c(qk[:, :C, :] + bq, gq, betq)           # (TB, C, S)
        k = _layernorm_c(qk[:, C:2 * C, :] + bk, gk, betk)      # (TB, C, S)

        # AvgPool2d(kernel=(1,inter), stride=(1,inter)) along S as one
        # (TB*C, s_keep) @ (s_keep, S') bf16 matmul (f32 accumulation).
        pool = pool_ref[...]                                    # (s_keep, S') bf16
        s_keep = extract_seq * inter
        tb = x.shape[0]

        def pool_s(y):
            y2 = y[:, :, :s_keep].reshape(tb * C, s_keep).astype(jnp.bfloat16)
            p = jnp.dot(y2, pool, preferred_element_type=jnp.float32)
            return p.reshape(tb, C, extract_seq).astype(jnp.bfloat16)

        qp = pool_s(q)                                          # (TB, C, S') bf16
        kp = pool_s(k)                                          # (TB, C, S') bf16

        # channel attention: einsum('b c s, b m s -> b c m') / sqrt(S').
        scaling = float(extract_seq) ** 0.5
        atten = jnp.einsum('bcp,bmp->bcm', qp, kp,
                           preferred_element_type=jnp.float32) / scaling

        # out = einsum('b c s, b c m -> b c s', x, softmax(atten)):
        # m is summed out, i.e. out = x * rowsum(softmax).  Take the row-sum
        # straight from the shifted-exp denominator (no full softmax + resum).
        m = jnp.max(atten, axis=-1, keepdims=True)
        e = jnp.exp(atten - m)
        denom = jnp.sum(e, axis=-1, keepdims=True)              # (TB, C, 1)
        rowsum = denom * pl.reciprocal(denom, approx=False)     # ~= 1
        out_cs = x * rowsum                                     # (TB, C, S)

    # projection: Linear(16,16) + LayerNorm(16) over channels; write (C, S).
    proj = _layernorm_c(_batched_wx(wp_b, out_cs) + bp, gp, betp)
    o_ref[...] = proj


def channel_attention(x, params, *, inter, block_bytes=2 << 20,
                      skip_attention_identity=False, min_grid_steps=4):
    """x: (b, o, C, S) float32.  Returns (b, o, C, S).

    `skip_attention_identity=True` is the recommended production path: it
    skips the q/k/pool/softmax branch (whose row-sum is mathematically 1),
    differing from the faithful path only by ~1e-7 fp rounding."""
    (wq, bq, gq, betq, wk, bk, gk, betk, wp, bp, gp, betp) = params
    b, o, c, s = x.shape
    assert c == C
    assert 1 <= inter <= s, "need 1 <= inter <= sequence length"
    extract_seq = s // inter
    s_keep = extract_seq * inter
    B = b * o
    x_flat = x.reshape(B, C, s).astype(jnp.float32)

    # ---- block sizing: ~block_bytes input blocks, but keep >= min_grid_steps
    # grid steps so the pipeline overlaps and both v7x TensorCores get work.
    bytes_per_slab = C * s * 4
    TB = int(max(1, block_bytes // bytes_per_slab))
    TB = int(min(TB, max(1, int(pl.cdiv(B, min_grid_steps)))))
    B_pad = ((B + TB - 1) // TB) * TB
    if B_pad != B:
        x_flat = jnp.pad(x_flat, ((0, B_pad - B), (0, 0), (0, 0)))
    grid = (B_pad // TB,)

    # ---- parameters.  Stack the 16x16 weights (Wq,Wk fused for one matmul)
    # and broadcast once in HBM; resident input -> DMA'd once, no per-step
    # jnp.broadcast_to inside the kernel.
    if skip_attention_identity:
        w_stack = wp[None]                                       # (1, C, C)
    else:
        w_stack = jnp.stack([wq, wk, wp], axis=0)                # (3, C, C)
    n_w = w_stack.shape[0] * C
    w_b = jnp.broadcast_to(
        w_stack.reshape(1, n_w, C).astype(jnp.float32), (TB, n_w, C))

    vec_packed = jnp.stack([bq, gq, betq, bk, gk, betk, bp, gp, betp],
                           axis=1).astype(jnp.float32)           # (C, 9)

    # Constant average-pooling matrix: P[i, j] = 1/inter if i // inter == j.
    rows = jnp.arange(s_keep) // inter
    cols = jnp.arange(extract_seq)
    pool = ((rows[:, None] == cols[None, :]).astype(jnp.float32)
            / float(inter)).astype(jnp.bfloat16)                 # (s_keep, S')

    # ---- explicit VMEM budget (v5e's scoped default is only 16 MiB; v7x has
    # 64 MiB physical so never request more than ~48 MiB).
    blk = TB * C * s * 4
    per_step = (4 if skip_attention_identity else 8) * blk
    resident = int(w_b.size) * 4 + int(vec_packed.size) * 4 + int(pool.size) * 2
    vmem_limit = int(min(48 << 20, max(32 << 20, int((per_step + resident) * 1.25))))

    kernel = functools.partial(
        channel_attention_kernel, inter=inter, extract_seq=extract_seq,
        skip_attn=skip_attention_identity)

    if skip_attention_identity:
        flops = B_pad * 2 * C * C * s
        transc = B_pad * s
    else:
        flops = B_pad * (3 * 2 * C * C * s
                         + 2 * 2 * C * s_keep * extract_seq
                         + 2 * C * C * extract_seq)
        transc = B_pad * (C * C + 3 * s)
    cost = pl.CostEstimate(
        flops=int(flops), transcendentals=int(transc),
        bytes_accessed=int(2 * B_pad * C * s * 4 + int(w_b.size) * 4))

    out = pl.pallas_call(
        kernel,
        out_shape=jax.ShapeDtypeStruct((B_pad, C, s), jnp.float32),
        grid_spec=pltpu.PrefetchScalarGridSpec(
            num_scalar_prefetch=0,
            grid=grid,
            in_specs=[
                pl.BlockSpec((TB, C, s), lambda i: (i, 0, 0)),
                pl.BlockSpec((TB, n_w, C), lambda i: (0, 0, 0)),   # resident
                pl.BlockSpec((C, 9), lambda i: (0, 0)),            # resident
                pl.BlockSpec((s_keep, extract_seq), lambda i: (0, 0)),
            ],
            out_specs=pl.BlockSpec((TB, C, s), lambda i: (i, 0, 0)),
        ),
        compiler_params=pltpu.CompilerParams(
            dimension_semantics=("parallel",),
            vmem_limit_bytes=vmem_limit),
        cost_estimate=cost,
    )(x_flat, w_b, vec_packed, pool)
    return out[:B].reshape(b, o, C, s)


def make_params(key):
    """Parameters mirroring the module layout (Linear weights xavier_normal_).

    The module inits bias=0 / gamma=1 / beta=0; small random affine values are
    used here so the bias/gamma/beta packing is exercised too."""
    std = (2.0 / (C + C)) ** 0.5
    keys = jax.random.split(key, 12)
    params = []
    for i in range(3):
        w = jax.random.normal(keys[4 * i], (C, C), jnp.float32) * std
        bias = jax.random.normal(keys[4 * i + 1], (C,), jnp.float32) * 0.1
        gamma = 1.0 + 0.1 * jax.random.normal(keys[4 * i + 2], (C,), jnp.float32)
        beta = jax.random.normal(keys[4 * i + 3], (C,), jnp.float32) * 0.1
        params += [w, bias, gamma, beta]
    return tuple(params)


def channel_attention_ref(x, params, *, inter):
    """Pure-JAX reference implementing the PyTorch forward (eval mode)."""
    (wq, bq, gq, betq, wk, bk, gk, betk, wp, bp, gp, betp) = params
    b, o, c, s = x.shape
    extract_seq = s // inter

    def ln(y, g, bt, eps=1e-5):
        mu = y.mean(-1, keepdims=True)
        var = ((y - mu) ** 2).mean(-1, keepdims=True)
        return (y - mu) * jax.lax.rsqrt(var + eps) * g + bt

    temp = jnp.transpose(x, (0, 1, 3, 2))                        # (b, o, s, c)
    q = ln(temp @ wq.T + bq, gq, betq)
    k = ln(temp @ wk.T + bk, gk, betk)
    q_cs = jnp.transpose(q, (0, 1, 3, 2))                        # (b, o, c, s)
    k_cs = jnp.transpose(k, (0, 1, 3, 2))
    s_keep = extract_seq * inter
    qp = q_cs[..., :s_keep].reshape(b, o, c, extract_seq, inter).mean(-1)
    kp = k_cs[..., :s_keep].reshape(b, o, c, extract_seq, inter).mean(-1)
    atten = jnp.einsum('bocs,boms->bocm', qp, kp) / (float(extract_seq) ** 0.5)
    score = jax.nn.softmax(atten, axis=-1)
    out = jnp.einsum('bocs,bocm->bocs', x, score)
    out_sc = jnp.transpose(out, (0, 1, 3, 2))
    proj = ln(out_sc @ wp.T + bp, gp, betp)
    return jnp.transpose(proj, (0, 1, 3, 2))


if __name__ == "__main__":
    key = jax.random.PRNGKey(0)
    kx, kparam, kx2 = jax.random.split(key, 3)
    params = make_params(kparam)

    # Case 1: small shapes: batch=2, o=2, channels=16 (fixed), S=64, inter=8.
    b, o, s, inter = 2, 2, 64, 8
    x = jax.random.normal(kx, (b, o, C, s), jnp.float32)
    ref = channel_attention_ref(x, params, inter=inter)

    out = channel_attention(x, params, inter=inter)           # faithful path
    out = jax.block_until_ready(out)
    assert out.shape == (b, o, C, s)
    assert jnp.allclose(out, ref, atol=1e-4, rtol=1e-4), "mismatch vs reference"

    out_fast = channel_attention(x, params, inter=inter,
                                 skip_attention_identity=True)
    out_fast = jax.block_until_ready(out_fast)
    assert jnp.allclose(out_fast, ref, atol=1e-4, rtol=1e-4), "fast path mismatch"

    # Case 2: lane-dense S (multiple of 128), multi-slab blocks, batch padding.
    b2, o2, s2, inter2 = 2, 5, 256, 4
    x2 = jax.random.normal(kx2, (b2, o2, C, s2), jnp.float32)
    ref2 = channel_attention_ref(x2, params, inter=inter2)
    out2 = channel_attention(x2, params, inter=inter2)
    out2 = jax.block_until_ready(out2)
    assert jnp.allclose(out2, ref2, atol=1e-4, rtol=1e-4), "case-2 mismatch"

    print("KERNEL_OK")
</pallas_src>

<mosaic_0001>
module attributes {stable_mosaic.version = 11 : i64} {
  func.func @channel_attention_kernel(%arg0: i32, %arg1: memref<1x16x64xf32, #tpu.memory_space<vmem>>, %arg2: memref<1x48x16xf32, #tpu.memory_space<vmem>>, %arg3: memref<16x9xf32, #tpu.memory_space<vmem>>, %arg4: memref<64x8xbf16, #tpu.memory_space<vmem>>, %arg5: memref<1x16x64xf32, #tpu.memory_space<vmem>>) attributes {dimension_semantics = [#tpu.dimension_semantics<parallel>], iteration_bounds = array<i64: 4>, scalar_prefetch = 0 : i64, scratch_operands = 0 : i64, tpu.core_type = #tpu.core_type<tc>, window_params = [{transform_indices = @transform_0, window_bounds = array<i64: 1, 16, 64>}, {pipeline_mode = #tpu.pipeline_mode<synchronous>, transform_indices = @transform_1, window_bounds = array<i64: 1, 48, 16>}, {pipeline_mode = #tpu.pipeline_mode<synchronous>, transform_indices = @transform_2, window_bounds = array<i64: 16, 9>}, {pipeline_mode = #tpu.pipeline_mode<synchronous>, transform_indices = @transform_3, window_bounds = array<i64: 64, 8>}, {transform_indices = @transform_4, window_bounds = array<i64: 1, 16, 64>}]} {
    %c0 = arith.constant 0 : index
    %c0_0 = arith.constant 0 : index
    %c0_1 = arith.constant 0 : index
    %0 = vector.load %arg1[%c0, %c0_0, %c0_1] : memref<1x16x64xf32, #tpu.memory_space<vmem>>, vector<1x16x64xf32>
    %c0_2 = arith.constant 0 : index
    %c0_3 = arith.constant 0 : index
    %c0_4 = arith.constant 0 : index
    %1 = vector.load %arg2[%c0_2, %c0_3, %c0_4] : memref<1x48x16xf32, #tpu.memory_space<vmem>>, vector<1x48x16xf32>
    %c0_5 = arith.constant 0 : index
    %c0_6 = arith.constant 0 : index
    %2 = vector.load %arg3[%c0_5, %c0_6] : memref<16x9xf32, #tpu.memory_space<vmem>>, vector<16x9xf32>
    %3 = vector.extract_strided_slice %2 {offsets = [0, 6], sizes = [16, 1], strides = [1, 1]} : vector<16x9xf32> to vector<16x1xf32>
    %4 = vector.extract_strided_slice %2 {offsets = [0, 7], sizes = [16, 1], strides = [1, 1]} : vector<16x9xf32> to vector<16x1xf32>
    %5 = vector.extract_strided_slice %2 {offsets = [0, 8], sizes = [16, 1], strides = [1, 1]} : vector<16x9xf32> to vector<16x1xf32>
    %6 = vector.extract_strided_slice %2 {offsets = [0, 0], sizes = [16, 1], strides = [1, 1]} : vector<16x9xf32> to vector<16x1xf32>
    %7 = vector.extract_strided_slice %2 {offsets = [0, 1], sizes = [16, 1], strides = [1, 1]} : vector<16x9xf32> to vector<16x1xf32>
    %8 = vector.extract_strided_slice %2 {offsets = [0, 2], sizes = [16, 1], strides = [1, 1]} : vector<16x9xf32> to vector<16x1xf32>
    %9 = vector.extract_strided_slice %2 {offsets = [0, 3], sizes = [16, 1], strides = [1, 1]} : vector<16x9xf32> to vector<16x1xf32>
    %10 = vector.extract_strided_slice %2 {offsets = [0, 4], sizes = [16, 1], strides = [1, 1]} : vector<16x9xf32> to vector<16x1xf32>
    %11 = vector.extract_strided_slice %2 {offsets = [0, 5], sizes = [16, 1], strides = [1, 1]} : vector<16x9xf32> to vector<16x1xf32>
    %12 = vector.extract_strided_slice %1 {offsets = [0, 32, 0], sizes = [1, 16, 16], strides = [1, 1, 1]} : vector<1x48x16xf32> to vector<1x16x16xf32>
    %13 = vector.extract_strided_slice %1 {offsets = [0, 0, 0], sizes = [1, 32, 16], strides = [1, 1, 1]} : vector<1x48x16xf32> to vector<1x32x16xf32>
    %cst = arith.constant dense<0.000000e+00> : vector<1x32x64xf32>
    %14 = tpu.matmul %13, %0, %cst {dimension_numbers = #tpu.dot_dimension_numbers<[2], [1], [1], [2], [0, 0, 0, 1, 1, 2], [0], [0]>} : vector<1x32x16xf32>, vector<1x16x64xf32>, vector<1x32x64xf32> -> vector<1x32x64xf32>
    %15 = vector.extract_strided_slice %14 {offsets = [0, 0, 0], sizes = [1, 16, 64], strides = [1, 1, 1]} : vector<1x32x64xf32> to vector<1x16x64xf32>
    %16 = vector.shape_cast %6 : vector<16x1xf32> to vector<1x16x1xf32>
    %17 = vector.broadcast %16 : vector<1x16x1xf32> to vector<1x16x64xf32>
    %18 = arith.addf %15, %17 : vector<1x16x64xf32>
    %cst_7 = arith.constant dense<0.000000e+00> : vector<1x64xf32>
    %19 = vector.multi_reduction <add>, %18, %cst_7 [1] : vector<1x16x64xf32> to vector<1x64xf32>
    %20 = vector.shape_cast %19 : vector<1x64xf32> to vector<1x1x64xf32>
    %cst_8 = arith.constant 1.600000e+01 : f32
    %21 = vector.broadcast %cst_8 : f32 to vector<1x1x64xf32>
    %22 = arith.divf %20, %21 : vector<1x1x64xf32>
    %23 = vector.broadcast %22 : vector<1x1x64xf32> to vector<1x16x64xf32>
    %24 = arith.subf %18, %23 : vector<1x16x64xf32>
    %25 = arith.mulf %24, %24 : vector<1x16x64xf32>
    %cst_9 = arith.constant dense<0.000000e+00> : vector<1x64xf32>
    %26 = vector.multi_reduction <add>, %25, %cst_9 [1] : vector<1x16x64xf32> to vector<1x64xf32>
    %27 = vector.shape_cast %26 : vector<1x64xf32> to vector<1x1x64xf32>
    %cst_10 = arith.constant 1.600000e+01 : f32
    %28 = vector.broadcast %cst_10 : f32 to vector<1x1x64xf32>
    %29 = arith.divf %27, %28 : vector<1x1x64xf32>
    %30 = vector.broadcast %22 : vector<1x1x64xf32> to vector<1x16x64xf32>
    %31 = arith.subf %18, %30 : vector<1x16x64xf32>
    %cst_11 = arith.constant 9.99999974E-6 : f32
    %32 = vector.broadcast %cst_11 : f32 to vector<1x1x64xf32>
    %33 = arith.addf %29, %32 : vector<1x1x64xf32>
    %34 = math.rsqrt %33 : vector<1x1x64xf32>
    %35 = vector.broadcast %34 : vector<1x1x64xf32> to vector<1x16x64xf32>
    %36 = arith.mulf %31, %35 : vector<1x16x64xf32>
    %37 = vector.shape_cast %7 : vector<16x1xf32> to vector<1x16x1xf32>
    %38 = vector.broadcast %37 : vector<1x16x1xf32> to vector<1x16x64xf32>
    %39 = arith.mulf %36, %38 : vector<1x16x64xf32>
    %40 = vector.shape_cast %8 : vector<16x1xf32> to vector<1x16x1xf32>
    %41 = vector.broadcast %40 : vector<1x16x1xf32> to vector<1x16x64xf32>
    %42 = arith.addf %39, %41 : vector<1x16x64xf32>
    %43 = vector.extract_strided_slice %14 {offsets = [0, 16, 0], sizes = [1, 16, 64], strides = [1, 1, 1]} : vector<1x32x64xf32> to vector<1x16x64xf32>
    %44 = vector.shape_cast %9 : vector<16x1xf32> to vector<1x16x1xf32>
    %45 = vector.broadcast %44 : vector<1x16x1xf32> to vector<1x16x64xf32>
    %46 = arith.addf %43, %45 : vector<1x16x64xf32>
    %cst_12 = arith.constant dense<0.000000e+00> : vector<1x64xf32>
    %47 = vector.multi_reduction <add>, %46, %cst_12 [1] : vector<1x16x64xf32> to vector<1x64xf32>
    %48 = vector.shape_cast %47 : vector<1x64xf32> to vector<1x1x64xf32>
    %cst_13 = arith.constant 1.600000e+01 : f32
    %49 = vector.broadcast %cst_13 : f32 to vector<1x1x64xf32>
    %50 = arith.divf %48, %49 : vector<1x1x64xf32>
    %51 = vector.broadcast %50 : vector<1x1x64xf32> to vector<1x16x64xf32>
    %52 = arith.subf %46, %51 : vector<1x16x64xf32>
    %53 = arith.mulf %52, %52 : vector<1x16x64xf32>
    %cst_14 = arith.constant dense<0.000000e+00> : vector<1x64xf32>
    %54 = vector.multi_reduction <add>, %53, %cst_14 [1] : vector<1x16x64xf32> to vector<1x64xf32>
    %55 = vector.shape_cast %54 : vector<1x64xf32> to vector<1x1x64xf32>
    %cst_15 = arith.constant 1.600000e+01 : f32
    %56 = vector.broadcast %cst_15 : f32 to vector<1x1x64xf32>
    %57 = arith.divf %55, %56 : vector<1x1x64xf32>
    %58 = vector.broadcast %50 : vector<1x1x64xf32> to vector<1x16x64xf32>
    %59 = arith.subf %46, %58 : vector<1x16x64xf32>
    %cst_16 = arith.constant 9.99999974E-6 : f32
    %60 = vector.broadcast %cst_16 : f32 to vector<1x1x64xf32>
    %61 = arith.addf %57, %60 : vector<1x1x64xf32>
    %62 = math.rsqrt %61 : vector<1x1x64xf32>
    %63 = vector.broadcast %62 : vector<1x1x64xf32> to vector<1x16x64xf32>
    %64 = arith.mulf %59, %63 : vector<1x16x64xf32>
    %65 = vector.shape_cast %10 : vector<16x1xf32> to vector<1x16x1xf32>
    %66 = vector.broadcast %65 : vector<1x16x1xf32> to vector<1x16x64xf32>
    %67 = arith.mulf %64, %66 : vector<1x16x64xf32>
    %68 = vector.shape_cast %11 : vector<16x1xf32> to vector<1x16x1xf32>
    %69 = vector.broadcast %68 : vector<1x16x1xf32> to vector<1x16x64xf32>
    %70 = arith.addf %67, %69 : vector<1x16x64xf32>
    %c0_17 = arith.constant 0 : index
    %c0_18 = arith.constant 0 : index
    %71 = vector.load %arg4[%c0_17, %c0_18] : memref<64x8xbf16, #tpu.memory_space<vmem>>, vector<64x8xbf16>
    %72 = vector.shape_cast %42 : vector<1x16x64xf32> to vector<16x64xf32>
    %73 = arith.truncf %72 : vector<16x64xf32> to vector<16x64xbf16>
    %cst_19 = arith.constant dense<0.000000e+00> : vector<16x8xf32>
    %74 = tpu.matmul %73, %71, %cst_19 {dimension_numbers = #tpu.dot_dimension_numbers<[1], [0], [0], [1], [0, 0, 1, 1], [], []>} : vector<16x64xbf16>, vector<64x8xbf16>, vector<16x8xf32> -> vector<16x8xf32>
    %75 = vector.shape_cast %74 : vector<16x8xf32> to vector<1x16x8xf32>
    %76 = arith.truncf %75 : vector<1x16x8xf32> to vector<1x16x8xbf16>
    %77 = vector.shape_cast %70 : vector<1x16x64xf32> to vector<16x64xf32>
    %78 = arith.truncf %77 : vector<16x64xf32> to vector<16x64xbf16>
    %cst_20 = arith.constant dense<0.000000e+00> : vector<16x8xf32>
    %79 = tpu.matmul %78, %71, %cst_20 {dimension_numbers = #tpu.dot_dimension_numbers<[1], [0], [0], [1], [0, 0, 1, 1], [], []>} : vector<16x64xbf16>, vector<64x8xbf16>, vector<16x8xf32> -> vector<16x8xf32>
    %80 = vector.shape_cast %79 : vector<16x8xf32> to vector<1x16x8xf32>
    %81 = arith.truncf %80 : vector<1x16x8xf32> to vector<1x16x8xbf16>
    "tpu.trace_start"() <{level = 10 : i32, message = "bcp,bmp->bcm"}> : () -> ()
    %cst_21 = arith.constant dense<0.000000e+00> : vector<1x16x16xf32>
    %82 = tpu.matmul %76, %81, %cst_21 {dimension_numbers = #tpu.dot_dimension_numbers<[2], [2], [1], [1], [0, 0, 0, 1, 1, 1], [0], [0]>} : vector<1x16x8xbf16>, vector<1x16x8xbf16>, vector<1x16x16xf32> -> vector<1x16x16xf32>
    "tpu.trace_stop"() : () -> ()
    %cst_22 = arith.constant 2.82842708 : f32
    %83 = vector.broadcast %cst_22 : f32 to vector<1x16x16xf32>
    %84 = arith.divf %82, %83 : vector<1x16x16xf32>
    %cst_23 = arith.constant dense<0xFF800000> : vector<1x16xf32>
    %85 = vector.multi_reduction <maximumf>, %84, %cst_23 [2] : vector<1x16x16xf32> to vector<1x16xf32>
    %86 = vector.shape_cast %85 : vector<1x16xf32> to vector<1x16x1xf32>
    %87 = vector.broadcast %86 : vector<1x16x1xf32> to vector<1x16x16xf32>
    %88 = arith.subf %84, %87 : vector<1x16x16xf32>
    %89 = math.exp %88 : vector<1x16x16xf32>
    %cst_24 = arith.constant dense<0.000000e+00> : vector<1x16xf32>
    %90 = vector.multi_reduction <add>, %89, %cst_24 [2] : vector<1x16x16xf32> to vector<1x16xf32>
    %91 = vector.shape_cast %90 : vector<1x16xf32> to vector<1x16x1xf32>
    %92 = tpu.reciprocal %91 : vector<1x16x1xf32> -> vector<1x16x1xf32>
    %93 = arith.mulf %91, %92 : vector<1x16x1xf32>
    %94 = vector.broadcast %93 : vector<1x16x1xf32> to vector<1x16x64xf32>
    %95 = arith.mulf %0, %94 : vector<1x16x64xf32>
    %cst_25 = arith.constant dense<0.000000e+00> : vector<1x16x64xf32>
    %96 = tpu.matmul %12, %95, %cst_25 {dimension_numbers = #tpu.dot_dimension_numbers<[2], [1], [1], [2], [0, 0, 0, 1, 1, 2], [0], [0]>} : vector<1x16x16xf32>, vector<1x16x64xf32>, vector<1x16x64xf32> -> vector<1x16x64xf32>
    %97 = vector.shape_cast %3 : vector<16x1xf32> to vector<1x16x1xf32>
    %98 = vector.broadcast %97 : vector<1x16x1xf32> to vector<1x16x64xf32>
    %99 = arith.addf %96, %98 : vector<1x16x64xf32>
    %cst_26 = arith.constant dense<0.000000e+00> : vector<1x64xf32>
    %100 = vector.multi_reduction <add>, %99, %cst_26 [1] : vector<1x16x64xf32> to vector<1x64xf32>
    %101 = vector.shape_cast %100 : vector<1x64xf32> to vector<1x1x64xf32>
    %cst_27 = arith.constant 1.600000e+01 : f32
    %102 = vector.broadcast %cst_27 : f32 to vector<1x1x64xf32>
    %103 = arith.divf %101, %102 : vector<1x1x64xf32>
    %104 = vector.broadcast %103 : vector<1x1x64xf32> to vector<1x16x64xf32>
    %105 = arith.subf %99, %104 : vector<1x16x64xf32>
    %106 = arith.mulf %105, %105 : vector<1x16x64xf32>
    %cst_28 = arith.constant dense<0.000000e+00> : vector<1x64xf32>
    %107 = vector.multi_reduction <add>, %106, %cst_28 [1] : vector<1x16x64xf32> to vector<1x64xf32>
    %108 = vector.shape_cast %107 : vector<1x64xf32> to vector<1x1x64xf32>
    %cst_29 = arith.constant 1.600000e+01 : f32
    %109 = vector.broadcast %cst_29 : f32 to vector<1x1x64xf32>
    %110 = arith.divf %108, %109 : vector<1x1x64xf32>
    %111 = vector.broadcast %103 : vector<1x1x64xf32> to vector<1x16x64xf32>
    %112 = arith.subf %99, %111 : vector<1x16x64xf32>
    %cst_30 = arith.constant 9.99999974E-6 : f32
    %113 = vector.broadcast %cst_30 : f32 to vector<1x1x64xf32>
    %114 = arith.addf %110, %113 : vector<1x1x64xf32>
    %115 = math.rsqrt %114 : vector<1x1x64xf32>
    %116 = vector.broadcast %115 : vector<1x1x64xf32> to vector<1x16x64xf32>
    %117 = arith.mulf %112, %116 : vector<1x16x64xf32>
    %118 = vector.shape_cast %4 : vector<16x1xf32> to vector<1x16x1xf32>
    %119 = vector.broadcast %118 : vector<1x16x1xf32> to vector<1x16x64xf32>
    %120 = arith.mulf %117, %119 : vector<1x16x64xf32>
    %121 = vector.shape_cast %5 : vector<16x1xf32> to vector<1x16x1xf32>
    %122 = vector.broadcast %121 : vector<1x16x1xf32> to vector<1x16x64xf32>
    %123 = arith.addf %120, %122 : vector<1x16x64xf32>
    %c0_31 = arith.constant 0 : index
    %c0_32 = arith.constant 0 : index
    %c0_33 = arith.constant 0 : index
    %124 = vector.load %arg5[%c0_31, %c0_32, %c0_33] : memref<1x16x64xf32, #tpu.memory_space<vmem>>, vector<1x16x64xf32>
    tpu.vector_store %arg5[%c0_31, %c0_32, %c0_33], %123 {strides = array<i32>} : memref<1x16x64xf32, #tpu.memory_space<vmem>>, vector<1x16x64xf32>,
    return
  }
  func.func @transform_0(%arg0: i32) -> (i32, i32, i32) {
    %c0_i32 = arith.constant 0 : i32
    %c0_i32_0 = arith.constant 0 : i32
    %c0_i32_1 = arith.constant 0 : i32
    return %arg0, %c0_i32, %c0_i32_0 : i32, i32, i32
  }
  func.func @transform_1(%arg0: i32) -> (i32, i32, i32) {
    %c0_i32 = arith.constant 0 : i32
    %c0_i32_0 = arith.constant 0 : i32
    %c0_i32_1 = arith.constant 0 : i32
    %c0_i32_2 = arith.constant 0 : i32
    return %c0_i32, %c0_i32_0, %c0_i32_1 : i32, i32, i32
  }
  func.func @transform_2(%arg0: i32) -> (i32, i32) {
    %c0_i32 = arith.constant 0 : i32
    %c0_i32_0 = arith.constant 0 : i32
    %c0_i32_1 = arith.constant 0 : i32
    return %c0_i32, %c0_i32_0 : i32, i32
  }
  func.func @transform_3(%arg0: i32) -> (i32, i32) {
    %c0_i32 = arith.constant 0 : i32
    %c0_i32_0 = arith.constant 0 : i32
    %c0_i32_1 = arith.constant 0 : i32
    return %c0_i32, %c0_i32_0 : i32, i32
  }
  func.func @transform_4(%arg0: i32) -> (i32, i32, i32) {
    %c0_i32 = arith.constant 0 : i32
    %c0_i32_0 = arith.constant 0 : i32
    %c0_i32_1 = arith.constant 0 : i32
    return %arg0, %c0_i32, %c0_i32_0 : i32, i32, i32
  }
}

</mosaic_0001>

<llo_original>
// kernel: tpu_custom_call.1
$region0: #{tpu_custom_call.1}
  #allocation0 [shape = 'u32[]', space=smem, size = 0x4, offset = 0x4, fixed_abs, tag = 'smem constant byte address 0x4 - core index']
  #allocation1 [shape = 'u32[144,128]{1,0:T(1,128)}', space=vmem, size = 0x12000, scoped, tag = 'internal scratch']
  %s0 = inlined_call_operand.vmem [shape: f32[4,16,64], index: 0, kind: input, shape index: {}]
  %s1 = inlined_call_operand.vmem [shape: f32[1,48,16], index: 1, kind: input, shape index: {}]
  %s2 = inlined_call_operand.vmem [shape: f32[16,9], index: 2, kind: input, shape index: {}]
  %s3 = inlined_call_operand.vmem [shape: bf16[64,8], index: 3, kind: input, shape index: {}]
  %s4 = inlined_call_operand.hbm [shape: f32[4,16,64], index: 4, kind: output, shape index: {}]
  %s5 = sld [smem:[#allocation0]]
  $region49: #{tpu_custom_call.1} parent=0
    _
  %s7 = ssub.s32 1, %s5
  %s8 = scalar_select 0, %s7, %s5
  $region1: #{tpu_custom_call.1} parent=0
    #allocation2 [shape = 'u8[16384]{0}', space=vmem, size = 0x4000, scoped, tag = 'output window, operand 0']
    #allocation3 [shape = 's32[2]{0}', space=sflag, size = 0x8, scoped, tag = 'scoped memory for tpu_custom_call.1']
    %9 = vsyncpa [#allocation3], 0
    %s10 = scalar_lea.sflag [#allocation3], 1
    %11 = vsyncpa %s10, 0
    loop: start=0, step=1, limit=6
    $region2: #{tpu_custom_call.1} parent=1 // loop_pre_header
      _
    $region3: #{tpu_custom_call.1} parent=1 // loop_header
      %s13 = sphi 0, %s17
      %p14 = scmp.ge.s32.totalorder %s13, 6
      %s23 = sphi 0, %s25
      %s26 = sphi 0, %s23
      %s27 = sphi 0, %s26
      %s43 = sphi 0, %s27
      %s47 = sphi 0, %s47
      %s49 = sphi 0, %s47
      %s50 = sphi 0, %s49
      %s64 = sphi 0, %s50
      %s68 = sphi 0, %s68
      %s70 = sphi 0, %s68
      %s71 = sphi 0, %s70
      %s85 = sphi 0, %s71
      %s89 = sphi 0, %s89
      %s91 = sphi 0, %s89
      %s92 = sphi 0, %s91
      %s106 = sphi 0, %s92
      %s112 = sphi 0, %s114
      %s115 = sphi 0, %s112
      %s116 = sphi 0, %s115
      %s132 = sphi 0, %s116
    $region4: #{tpu_custom_call.1} parent=1 // loop_header_branch
      %16 = sbr.rel (%p14) target = $region8
    $region5: #{tpu_custom_call.1} parent=1 // loop_body
      %s18 = ssub.s32 %s13, 1
      %s19 = ssub.s32 %s13, 2
      %s20 = sadd.s32 %s13, 1
      %s21 = ssub.s32 %s13, %s20
      %p22 = scmp.eq.s32.totalorder %s21, 0
      %s24 = sadd.s32 %s23, 1
      %s25 = scalar_select %p22, %s23, %s24
      %p28 = pneg %p22
      %p29 = scmp.eq.s32.totalorder %s13, 3
      %p30 = por %p28, %p29
      %p31 = scmp.ne.s32.totalorder %s23, %s26
      %p32 = scmp.eq.s32.totalorder %s13, 0
      %p33 = por %p31, %p32
      %p34 = scmp.ne.s32.totalorder %s23, %s26
      %p35 = scmp.eq.s32.totalorder %s18, 3
      %p36 = por %p34, %p35
      %p37 = scmp.ne.s32.totalorder %s26, %s27
      %p38 = scmp.eq.s32.totalorder %s18, 0
      %p39 = por %p37, %p38
      %p40 = scmp.ne.s32.totalorder %s26, %s27
      %p41 = scmp.eq.s32.totalorder %s19, 3
      %p42 = por %p40, %p41
      %p44 = scmp.ne.s32.totalorder %s27, %s43
      %p45 = scmp.eq.s32.totalorder %s19, 0
      %p46 = por %p44, %p45
      %s48 = sadd.s32 %s47, 1
      %p51 = scmp.eq.s32.totalorder %s13, 3
      %p52 = scmp.ne.s32.totalorder %s47, %s49
      %p53 = scmp.eq.s32.totalorder %s13, 0
      %p54 = por %p52, %p53
      %p55 = scmp.ne.s32.totalorder %s47, %s49
      %p56 = scmp.eq.s32.totalorder %s18, 3
      %p57 = por %p55, %p56
      %p58 = scmp.ne.s32.totalorder %s49, %s50
      %p59 = scmp.eq.s32.totalorder %s18, 0
      %p60 = por %p58, %p59
      %p61 = scmp.ne.s32.totalorder %s49, %s50
      %p62 = scmp.eq.s32.totalorder %s19, 3
      %p63 = por %p61, %p62
      %p65 = scmp.ne.s32.totalorder %s50, %s64
      %p66 = scmp.eq.s32.totalorder %s19, 0
      %p67 = por %p65, %p66
      %s69 = sadd.s32 %s68, 1
      %p72 = scmp.eq.s32.totalorder %s13, 3
      %p73 = scmp.ne.s32.totalorder %s68, %s70
      %p74 = scmp.eq.s32.totalorder %s13, 0
      %p75 = por %p73, %p74
      %p76 = scmp.ne.s32.totalorder %s68, %s70
      %p77 = scmp.eq.s32.totalorder %s18, 3
      %p78 = por %p76, %p77
      %p79 = scmp.ne.s32.totalorder %s70, %s71
      %p80 = scmp.eq.s32.totalorder %s18, 0
      %p81 = por %p79, %p80
      %p82 = scmp.ne.s32.totalorder %s70, %s71
      %p83 = scmp.eq.s32.totalorder %s19, 3
      %p84 = por %p82, %p83
      %p86 = scmp.ne.s32.totalorder %s71, %s85
      %p87 = scmp.eq.s32.totalorder %s19, 0
      %p88 = por %p86, %p87
      %s90 = sadd.s32 %s89, 1
      %p93 = scmp.eq.s32.totalorder %s13, 3
      %p94 = scmp.ne.s32.totalorder %s89, %s91
      %p95 = scmp.eq.s32.totalorder %s13, 0
      %p96 = por %p94, %p95
      %p97 = scmp.ne.s32.totalorder %s89, %s91
      %p98 = scmp.eq.s32.totalorder %s18, 3
      %p99 = por %p97, %p98
      %p100 = scmp.ne.s32.totalorder %s91, %s92
      %p101 = scmp.eq.s32.totalorder %s18, 0
      %p102 = por %p100, %p101
      %p103 = scmp.ne.s32.totalorder %s91, %s92
      %p104 = scmp.eq.s32.totalorder %s19, 3
      %p105 = por %p103, %p104
      %p107 = scmp.ne.s32.totalorder %s92, %s106
      %p108 = scmp.eq.s32.totalorder %s19, 0
      %p109 = por %p107, %p108
      %s110 = ssub.s32 %s13, %s20
      %p111 = scmp.eq.s32.totalorder %s110, 0
      %s113 = sadd.s32 %s112, 1
      %s114 = scalar_select %p111, %s112, %s113
      %p117 = pneg %p111
      %p118 = scmp.eq.s32.totalorder %s13, 3
      %p119 = por %p117, %p118
      %p120 = scmp.ne.s32.totalorder %s112, %s115
      %p121 = scmp.eq.s32.totalorder %s13, 0
      %p122 = por %p120, %p121
      %p123 = scmp.ne.s32.totalorder %s112, %s115
      %p124 = scmp.eq.s32.totalorder %s18, 3
      %p125 = por %p123, %p124
      %p126 = scmp.ne.s32.totalorder %s115, %s116
      %p127 = scmp.eq.s32.totalorder %s18, 0
      %p128 = por %p126, %p127
      %p129 = scmp.ne.s32.totalorder %s115, %s116
      %p130 = scmp.eq.s32.totalorder %s19, 3
      %p131 = por %p129, %p130
      %p133 = scmp.ne.s32.totalorder %s116, %s132
      %p134 = scmp.eq.s32.totalorder %s19, 0
      %p135 = por %p133, %p134
      %p136 = scmp.le.s32.totalorder 1, %s13
      %p137 = scmp.lt.s32.totalorder %s13, 5
      %p138 = pnand %p136, %p137
      %p139 = pneg %p138
      // Predicated region
      $region9: #{tpu_custom_call.1} parent=5 // pred_check
        _
      $region10: #{tpu_custom_call.1} parent=5 // pred_check_branch
        %141 = sbr.rel (%p138) target = $region12
      $region11: #{tpu_custom_call.1} parent=5 // pred_region
        %s142 = ssub.s32 %s13, 1
        // Predicated region
        $region13: #{tpu_custom_call.1} parent=11 // pred_check
          %p143 = pneg %p60
        $region14: #{tpu_custom_call.1} parent=11 // pred_check_branch
          %145 = sbr.rel (%p143) target = $region16
        $region15: #{tpu_custom_call.1} parent=11 // pred_region
          _
        $region16: #{tpu_custom_call.1} parent=11 // pred_fallthru
          _
        // Predicated region
        $region17: #{tpu_custom_call.1} parent=11 // pred_check
          %p146 = pneg %p81
        $region18: #{tpu_custom_call.1} parent=11 // pred_check_branch
          %148 = sbr.rel (%p146) target = $region20
        $region19: #{tpu_custom_call.1} parent=11 // pred_region
          _
        $region20: #{tpu_custom_call.1} parent=11 // pred_fallthru
          _
        // Predicated region
        $region21: #{tpu_custom_call.1} parent=11 // pred_check
          %p149 = pneg %p102
        $region22: #{tpu_custom_call.1} parent=11 // pred_check_branch
          %151 = sbr.rel (%p149) target = $region24
        $region23: #{tpu_custom_call.1} parent=11 // pred_region
          _
        $region24: #{tpu_custom_call.1} parent=11 // pred_fallthru
          _
      $region12: #{tpu_custom_call.1} parent=5 // pred_fallthru
        _
      %p152 = scmp.lt.s32.totalorder %s13, 4
      // Predicated region
      $region25: #{tpu_custom_call.1} parent=5 // pred_check
        %p153 = pneg %p152
      $region26: #{tpu_custom_call.1} parent=5 // pred_check_branch
        %155 = sbr.rel (%p153) target = $region28
      $region27: #{tpu_custom_call.1} parent=5 // pred_region
        // Predicated region
        $region29: #{tpu_custom_call.1} parent=27 // pred_check
          %p156 = pneg %p33
        $region30: #{tpu_custom_call.1} parent=27 // pred_check_branch
          %158 = sbr.rel (%p156) target = $region32
        $region31: #{tpu_custom_call.1} parent=27 // pred_region
          %p159 = scmp.lt.s32.totalorder %s13, 3
          %s160 = scalar_select %p159, %s13, 3
          %s161 = smul.addr %s160, 2
          %s162 = smul.addr %s161, 8
          %s163 = scalar_lea.vmem %s0, %s162
        $region32: #{tpu_custom_call.1} parent=27 // pred_fallthru
          _
      $region28: #{tpu_custom_call.1} parent=5 // pred_fallthru
        _
      %p164 = scmp.le.s32.totalorder 1, %s13
      %p165 = scmp.lt.s32.totalorder %s13, 5
      %p166 = pnand %p164, %p165
      %p167 = pneg %p166
      // Predicated region
      $region33: #{tpu_custom_call.1} parent=5 // pred_check
        _
      $region34: #{tpu_custom_call.1} parent=5 // pred_check_branch
        %169 = sbr.rel (%p166) target = $region36
      $region35: #{tpu_custom_call.1} parent=5 // pred_region
        %s170 = ssub.s32 %s13, 1
        %p171 = scmp.lt.s32.totalorder %s18, 3
        %s172 = scalar_select %p171, %s18, 3
        %s173 = smul.addr %s172, 2
        %s174 = smul.addr %s173, 8
        %s175 = scalar_lea.vmem %s0, %s174
        %p176 = pneg %p39
        %p177 = pneg %p36
        %p178 = pneg %p60
        %p179 = pneg %p57
        %p180 = pneg %p81
        %p181 = pneg %p78
        %p182 = pneg %p102
        %p183 = pneg %p99
        %p184 = pneg %p128
        %p185 = pneg %p125
        %s186 = sand.u32 %s115, 1
        %s187 = scalar_lea.sflag [#allocation3], %s186
        %s188 = sand.u32 %s115, 1
        %s189 = smul.addr %s188, 16
        %s190 = scalar_lea.vmem [#allocation2], %s189
        %p191 = scmp.lt.s32.totalorder %s18, 3
        %s192 = scalar_select %p191, %s18, 3
        %s193 = smul.addr %s192, 2
        %s194 = smul.addr %s193, 8
        %s195 = scalar_lea.vmem %s0, %s194
        %v197 = vld [vmem:[%s195] sm:$0xff]
        %v198 = vld [vmem:[%s195 + $0x8] sm:$0xff]
        %v199 = vld [vmem:[%s1] sm:$0xff]
        %v200 = vld [vmem:[%s1 + $0x8] sm:$0xff]
        %v201 = vld [vmem:[%s1 + $0x10] sm:$0xff]
        %v202 = vld [vmem:[%s1 + $0x18] sm:$0xff]
        %v203 = vld [vmem:[%s1 + $0x20] sm:$0xff]
        %v204 = vld [vmem:[%s1 + $0x28] sm:$0xff]
        %v205 = vld [vmem:[%s2] sm:$0xff]
        %v206 = vld [vmem:[%s2 + $0x8] sm:$0xff]
        %vm207 = vcmask 130048
        %v209 = vsel %vm207, %v199, 0
        %v212 = vsel %vm207, %v200, 0
        %v215 = vsel %vm207, %v201, 0
        %v218 = vsel %vm207, %v202, 0
        %220 = vmatprep.subr.mxu0 0.0
        %221 = vmatpush1.msra.mxu0 0.0
        %222 = vmatprep.subr.mxu0 0.0
        %223 = vmatpush1.msra.mxu0 0.0
        %224 = vmatprep.subr.mxu0 0.0
        %225 = vmatpush1.msra.mxu0 0.0
        %226 = vmatprep.subr.mxu0 0.0
        %227 = vmatpush1.msra.mxu0 0.0
        %228 = vmatprep.subr.mxu0 0.0
        %229 = vmatpush1.msra.mxu0 0.0
        %230 = vmatprep.subr.mxu0 0.0
        %231 = vmatpush1.msra.mxu0 0.0
        %232 = vmatprep.subr.mxu0 0.0
        %233 = vmatpush1.msra.mxu0 0.0
        %234 = vmatprep.subr.mxu0 0.0
        %235 = vmatpush1.msra.mxu0 0.0
        %236 = vmatprep.subr.mxu0 0.0
        %237 = vmatpush1.msra.mxu0 0.0
        %238 = vmatprep.subr.mxu0 0.0
        %239 = vmatpush1.msra.mxu0 0.0
        %240 = vmatprep.subr.mxu0 0.0
        %241 = vmatpush1.msra.mxu0 0.0
        %242 = vmatprep.subr.mxu0 0.0
        %243 = vmatpush1.msra.mxu0 0.0
        %244 = vmatprep.subr.mxu0 0.0
        %245 = vmatpush1.msra.mxu0 0.0
        %246 = vmatprep.subr.mxu0 0.0
        %247 = vmatpush1.msra.mxu0 0.0
        %248 = vmatprep.subr.mxu0 0.0
        %249 = vmatpush1.msra.mxu0 %v198
        %250 = vmatprep.subr.mxu0 0.0
        %251 = vmatpush1.msra.mxu0 %v197
        %252 = vmatprep.subr.mxu0 0.0
        %253 = vmatpush2.msra.mxu0 0.0
        %254 = vmatprep.subr.mxu0 0.0
        %255 = vmatpush2.msra.mxu0 0.0
        %256 = vmatprep.subr.mxu0 0.0
        %257 = vmatpush2.msra.mxu0 0.0
        %258 = vmatprep.subr.mxu0 0.0
        %259 = vmatpush2.msra.mxu0 0.0
        %260 = vmatprep.subr.mxu0 0.0
        %261 = vmatpush2.msra.mxu0 0.0
        %262 = vmatprep.subr.mxu0 0.0
        %263 = vmatpush2.msra.mxu0 0.0
        %264 = vmatprep.subr.mxu0 0.0
        %265 = vmatpush2.msra.mxu0 0.0
        %266 = vmatprep.subr.mxu0 0.0
        %267 = vmatpush2.msra.mxu0 0.0
        %268 = vmatprep.subr.mxu0 0.0
        %269 = vmatpush2.msra.mxu0 0.0
        %270 = vmatprep.subr.mxu0 0.0
        %271 = vmatpush2.msra.mxu0 0.0
        %272 = vmatprep.subr.mxu0 0.0
        %273 = vmatpush2.msra.mxu0 0.0
        %274 = vmatprep.subr.mxu0 0.0
        %275 = vmatpush2.msra.mxu0 0.0
        %276 = vmatprep.subr.mxu0 0.0
        %277 = vmatpush2.msra.mxu0 0.0
        %278 = vmatprep.subr.mxu0 0.0
        %279 = vmatpush2.msra.mxu0 0.0
        %280 = vmatprep.subr.mxu0 0.0
        %281 = vmatpush2.msra.mxu0 0.0
        %282 = vmatprep.subr.mxu0 0.0
        %283 = vmatpush2.msra.mxu0 0.0
        %284 = vmatprep.mubr.f32.mxu0 0.0
        %285 = vmatmul.mubr.f32.gmra.mxu0 %v209
        %v286 = vpop.f32.mrf.mxu0
        %v287 = vadd.f32 0.0, %v286
        %v288 = vpop.f32.mrf.mxu0
        %289 = vmatprep.mubr.f32.mxu0 0.0
        %290 = vmatmul.mubr.f32.gmra.mxu0 %v212
        %v291 = vpop.f32.mrf.mxu0
        %v292 = vadd.f32 0.0, %v291
        %v293 = vpop.f32.mrf.mxu0
        %294 = vmatprep.mubr.f32.mxu0 0.0
        %295 = vmatmul.mubr.f32.gmra.mxu0 %v215
        %v296 = vpop.f32.mrf.mxu0
        %v297 = vadd.f32 0.0, %v296
        %v298 = vpop.f32.mrf.mxu0
        %299 = vmatprep.mubr.f32.mxu0 0.0
        %300 = vmatmul.mubr.f32.gmra.mxu0 %v218
        %v301 = vpop.f32.mrf.mxu0
        %v302 = vadd.f32 0.0, %v301
        %v303 = vpop.f32.mrf.mxu0
        %304 = vdwg.mxu0
        %306 = vset.pattern.permute.xlu0 0
        %307 = vperm.xlu0 %306, %v205
        %v308 = vpop.permute.xlu0 %307
        %311 = vset.pattern.permute.xlu0 0
        %312 = vperm.xlu0 %311, %v206
        %v313 = vpop.permute.xlu0 %312
        %v315 = vadd.f32 %v287, %v308
        %v316 = vadd.f32 %v292, %v313
        %vm317 = vcmask 523264
        %v318 = vsel %vm317, %v315, 0.0
        %v319 = vsel %vm317, %v316, 0.0
        %v320 = vadd.f32 %v318, %v319
        %v321 = vrot.slane %v320, 4
        %v322 = vadd.f32 %v320, %v321
        %v323 = vrot.slane %v322, 2
        %v324 = vadd.f32 %v322, %v323
        %v325 = vrot.slane %v324, 1
        %v326 = vadd.f32 %v324, %v325
        %v327 = vrcp.pop 16.0
        %v328 = vmul.f32 %v326, %v327
        %v329 = vsub.f32 %v315, %v328
        %v330 = vsub.f32 %v316, %v328
        %v331 = vmul.f32 %v329, %v329
        %v332 = vmul.f32 %v330, %v330
        %v333 = vsel %vm317, %v331, 0.0
        %v334 = vsel %vm317, %v332, 0.0
        %v335 = vadd.f32 %v333, %v334
        %v336 = vrot.slane %v335, 4
        %v337 = vadd.f32 %v335, %v336
        %v338 = vrot.slane %v337, 2
        %v339 = vadd.f32 %v337, %v338
        %v340 = vrot.slane %v339, 1
        %v341 = vadd.f32 %v339, %v340
        %v342 = vmul.f32 %v341, %v327
        %v343 = vadd.f32 %v342, 1e-05
        %v344 = vrsqrt.pop %v343
        %v345 = vmul.f32 %v329, %v344
        %v346 = vmul.f32 %v330, %v344
        %347 = vset.pattern.permute.xlu0 1
        %348 = vperm.xlu0 %347, %v205
        %v349 = vpop.permute.xlu0 %348
        %351 = vset.pattern.permute.xlu0 1
        %352 = vperm.xlu0 %351, %v206
        %v353 = vpop.permute.xlu0 %352
        %v355 = vmul.f32 %v345, %v349
        %v356 = vmul.f32 %v346, %v353
        %357 = vset.pattern.permute.xlu0 2
        %358 = vperm.xlu0 %357, %v205
        %v359 = vpop.permute.xlu0 %358
        %361 = vset.pattern.permute.xlu0 2
        %362 = vperm.xlu0 %361, %v206
        %v363 = vpop.permute.xlu0 %362
        %v365 = vadd.f32 %v355, %v359
        %v366 = vadd.f32 %v356, %v363
        %367 = vset.pattern.permute.xlu0 3
        %368 = vperm.xlu0 %367, %v205
        %v369 = vpop.permute.xlu0 %368
        %371 = vset.pattern.permute.xlu0 3
        %372 = vperm.xlu0 %371, %v206
        %v373 = vpop.permute.xlu0 %372
        %v375 = vadd.f32 %v297, %v369
        %v376 = vadd.f32 %v302, %v373
        %v377 = vsel %vm317, %v375, 0.0
        %v378 = vsel %vm317, %v376, 0.0
        %v379 = vadd.f32 %v377, %v378
        %v380 = vrot.slane %v379, 4
        %v381 = vadd.f32 %v379, %v380
        %v382 = vrot.slane %v381, 2
        %v383 = vadd.f32 %v381, %v382
        %v384 = vrot.slane %v383, 1
        %v385 = vadd.f32 %v383, %v384
        %v386 = vmul.f32 %v385, %v327
        %v387 = vsub.f32 %v375, %v386
        %v388 = vsub.f32 %v376, %v386
        %v389 = vmul.f32 %v387, %v387
        %v390 = vmul.f32 %v388, %v388
        %v391 = vsel %vm317, %v389, 0.0
        %v392 = vsel %vm317, %v390, 0.0
        %v393 = vadd.f32 %v391, %v392
        %v394 = vrot.slane %v393, 4
        %v395 = vadd.f32 %v393, %v394
        %v396 = vrot.slane %v395, 2
        %v397 = vadd.f32 %v395, %v396
        %v398 = vrot.slane %v397, 1
        %v399 = vadd.f32 %v397, %v398
        %v400 = vmul.f32 %v399, %v327
        %v401 = vadd.f32 %v400, 1e-05
        %v402 = vrsqrt.pop %v401
        %v403 = vmul.f32 %v387, %v402
        %v404 = vmul.f32 %v388, %v402
        %405 = vset.pattern.permute.xlu0 4
        %406 = vperm.xlu0 %405, %v205
        %v407 = vpop.permute.xlu0 %406
        %409 = vset.pattern.permute.xlu0 4
        %410 = vperm.xlu0 %409, %v206
        %v411 = vpop.permute.xlu0 %410
        %v413 = vmul.f32 %v403, %v407
        %v414 = vmul.f32 %v404, %v411
        %415 = vset.pattern.permute.xlu0 5
        %416 = vperm.xlu0 %415, %v205
        %v417 = vpop.permute.xlu0 %416
        %419 = vset.pattern.permute.xlu0 5
        %420 = vperm.xlu0 %419, %v206
        %v421 = vpop.permute.xlu0 %420
        %v423 = vadd.f32 %v413, %v417
        %v424 = vadd.f32 %v414, %v421
        %v425 = vld [vmem:[%s3] sm:$0xf]
        %v426 = vld [vmem:[%s3 + $0x4] sm:$0xf]
        %v427 = vld [vmem:[%s3 + $0x8] sm:$0xf]
        %v428 = vld [vmem:[%s3 + $0xc] sm:$0xf]
        %v429 = vld [vmem:[%s3 + $0x10] sm:$0xf]
        %v430 = vld [vmem:[%s3 + $0x14] sm:$0xf]
        %v431 = vld [vmem:[%s3 + $0x18] sm:$0xf]
        %v432 = vld [vmem:[%s3 + $0x1c] sm:$0xf]
        %v433 = vpack.c.bf16 %v366, %v365
        %v442 = vunpack.c.l.b16 %v425
        %v443 = vunpack.c.l.b16 %v426
        %v444 = vunpack.c.l.b16 %v427
        %v445 = vunpack.c.l.b16 %v428
        %v446 = vunpack.c.l.b16 %v429
        %v447 = vunpack.c.l.b16 %v430
        %v448 = vunpack.c.l.b16 %v431
        %v449 = vunpack.c.l.b16 %v432
        %v450 = vpack.c.b16 %v443, %v442
        %v451 = vpack.c.b16 %v445, %v444
        %v452 = vpack.c.b16 %v447, %v446
        %v453 = vpack.c.b16 %v449, %v448
        %v459 = vsel %vm317, %v433, 0
        %461 = vmatprep.subr.bf16.mxu0 0
        %462 = vmatpush1.bf16.msra.mxu0 0
        %463 = vmatprep.subr.bf16.mxu0 0
        %464 = vmatpush1.bf16.msra.mxu0 0
        %465 = vmatprep.subr.bf16.mxu0 0
        %466 = vmatpush1.bf16.msra.mxu0 0
        %467 = vmatprep.subr.bf16.mxu0 0
        %468 = vmatpush1.bf16.msra.mxu0 0
        %469 = vmatprep.subr.bf16.mxu0 0
        %470 = vmatpush1.bf16.msra.mxu0 %v453
        %471 = vmatprep.subr.bf16.mxu0 0
        %472 = vmatpush1.bf16.msra.mxu0 %v452
        %473 = vmatprep.subr.bf16.mxu0 0
        %474 = vmatpush1.bf16.msra.mxu0 %v451
        %475 = vmatprep.subr.bf16.mxu0 0
        %476 = vmatpush1.bf16.msra.mxu0 %v450
        %477 = vmatprep.subr.bf16.mxu0 0
        %478 = vmatpush2.bf16.msra.mxu0 0
        %479 = vmatprep.subr.bf16.mxu0 0
        %480 = vmatpush2.bf16.msra.mxu0 0
        %481 = vmatprep.subr.bf16.mxu0 0
        %482 = vmatpush2.bf16.msra.mxu0 0
        %483 = vmatprep.subr.bf16.mxu0 0
        %484 = vmatpush2.bf16.msra.mxu0 0
        %485 = vmatprep.subr.bf16.mxu0 0
        %486 = vmatpush2.bf16.msra.mxu0 0
        %487 = vmatprep.subr.bf16.mxu0 0
        %488 = vmatpush2.bf16.msra.mxu0 0
        %489 = vmatprep.subr.bf16.mxu0 0
        %490 = vmatpush2.bf16.msra.mxu0 0
        %491 = vmatprep.subr.bf16.mxu0 0
        %492 = vmatpush2.bf16.msra.mxu0 0
        %493 = vmatprep.mubr.bf16.mxu0 0
        %494 = vmatmul.mubr.bf16.gmra.mxu0 %v459
        %v495 = vpop.f32.mrf.mxu0
        %v496 = vadd.f32 0.0, %v495
        %v497 = vpop.f32.mrf.mxu0
        %v498 = vpop.f32.mrf.mxu0
        %v499 = vadd.f32 0.0, %v498
        %v500 = vpop.f32.mrf.mxu0
        %501 = vdwg.mxu0
        %v502 = vpack.c.bf16 %v499, %v496
        %v503 = vpack.c.bf16 %v424, %v423
        %v505 = vsel %vm317, %v503, 0
        %507 = vmatprep.subr.bf16.mxu0 0
        %508 = vmatpush1.bf16.msra.mxu0 0
        %509 = vmatprep.subr.bf16.mxu0 0
        %510 = vmatpush1.bf16.msra.mxu0 0
        %511 = vmatprep.subr.bf16.mxu0 0
        %512 = vmatpush1.bf16.msra.mxu0 0
        %513 = vmatprep.subr.bf16.mxu0 0
        %514 = vmatpush1.bf16.msra.mxu0 0
        %515 = vmatprep.subr.bf16.mxu0 0
        %516 = vmatpush1.bf16.msra.mxu0 %v453
        %517 = vmatprep.subr.bf16.mxu0 0
        %518 = vmatpush1.bf16.msra.mxu0 %v452
        %519 = vmatprep.subr.bf16.mxu0 0
        %520 = vmatpush1.bf16.msra.mxu0 %v451
        %521 = vmatprep.subr.bf16.mxu0 0
        %522 = vmatpush1.bf16.msra.mxu0 %v450
        %523 = vmatprep.subr.bf16.mxu0 0
        %524 = vmatpush2.bf16.msra.mxu0 0
        %525 = vmatprep.subr.bf16.mxu0 0
        %526 = vmatpush2.bf16.msra.mxu0 0
        %527 = vmatprep.subr.bf16.mxu0 0
        %528 = vmatpush2.bf16.msra.mxu0 0
        %529 = vmatprep.subr.bf16.mxu0 0
        %530 = vmatpush2.bf16.msra.mxu0 0
        %531 = vmatprep.subr.bf16.mxu0 0
        %532 = vmatpush2.bf16.msra.mxu0 0
        %533 = vmatprep.subr.bf16.mxu0 0
        %534 = vmatpush2.bf16.msra.mxu0 0
        %535 = vmatprep.subr.bf16.mxu0 0
        %536 = vmatpush2.bf16.msra.mxu0 0
        %537 = vmatprep.subr.bf16.mxu0 0
        %538 = vmatpush2.bf16.msra.mxu0 0
        %539 = vmatprep.mubr.bf16.mxu0 0
        %540 = vmatmul.mubr.bf16.gmra.mxu0 %v505
        %v541 = vpop.f32.mrf.mxu0
        %v542 = vadd.f32 0.0, %v541
        %v543 = vpop.f32.mrf.mxu0
        %v544 = vpop.f32.mrf.mxu0
        %v545 = vadd.f32 0.0, %v544
        %v546 = vpop.f32.mrf.mxu0
        %547 = vdwg.mxu0
        %v548 = vpack.c.bf16 %v545, %v542
        %vm549 = vcmask 64512
        %v551 = vsel %vm549, %v502, 0
        %v554 = vsel %vm549, %v548, 0
        %556 = vmatprep.subr.bf16.mxu0 0
        %557 = vmatpush1.bf16.xpose.msra.mxu0 0
        %558 = vmatprep.subr.bf16.mxu0 0
        %559 = vmatpush1.bf16.xpose.msra.mxu0 0
        %560 = vmatprep.subr.bf16.mxu0 0
        %561 = vmatpush1.bf16.xpose.msra.mxu0 0
        %562 = vmatprep.subr.bf16.mxu0 0
        %563 = vmatpush1.bf16.xpose.msra.mxu0 0
        %564 = vmatprep.subr.bf16.mxu0 0
        %565 = vmatpush1.bf16.xpose.msra.mxu0 0
        %566 = vmatprep.subr.bf16.mxu0 0
        %567 = vmatpush1.bf16.xpose.msra.mxu0 0
        %568 = vmatprep.subr.bf16.mxu0 0
        %569 = vmatpush1.bf16.xpose.msra.mxu0 0
        %570 = vmatprep.subr.bf16.mxu0 0
        %571 = vmatpush1.bf16.xpose.msra.mxu0 %v554
        %572 = vmatprep.subr.bf16.mxu0 0
        %573 = vmatpush2.bf16.xpose.msra.mxu0 0
        %574 = vmatprep.subr.bf16.mxu0 0
        %575 = vmatpush2.bf16.xpose.msra.mxu0 0
        %576 = vmatprep.subr.bf16.mxu0 0
        %577 = vmatpush2.bf16.xpose.msra.mxu0 0
        %578 = vmatprep.subr.bf16.mxu0 0
        %579 = vmatpush2.bf16.xpose.msra.mxu0 0
        %580 = vmatprep.subr.bf16.mxu0 0
        %581 = vmatpush2.bf16.xpose.msra.mxu0 0
        %582 = vmatprep.subr.bf16.mxu0 0
        %583 = vmatpush2.bf16.xpose.msra.mxu0 0
        %584 = vmatprep.subr.bf16.mxu0 0
        %585 = vmatpush2.bf16.xpose.msra.mxu0 0
        %586 = vmatprep.subr.bf16.mxu0 0
        %587 = vmatpush2.bf16.xpose.msra.mxu0 0
        %588 = vmatprep.mubr.bf16.mxu0 0
        %589 = vmatmul.mubr.bf16.gmra.mxu0 %v551
        %v590 = vpop.f32.mrf.mxu0
        %v591 = vadd.f32 0.0, %v590
        %v592 = vpop.f32.mrf.mxu0
        %v593 = vpop.f32.mrf.mxu0
        %v594 = vadd.f32 0.0, %v593
        %v595 = vpop.f32.mrf.mxu0
        %596 = vdwg.mxu0
        %v597 = vrcp.pop 2.828427
        %v598 = vmul.f32 %v591, %v597
        %v599 = vmul.f32 %v594, %v597
        %v600 = vsel %vm207, %v598, -inf
        %601 = vmax.xlane.f32.xlu0 %v600
        %v602 = vpop.xlane.xlu0 %601
        %v603 = vsel %vm207, %v599, -inf
        %604 = vmax.xlane.f32.xlu0 %v603
        %v605 = vpop.xlane.xlu0 %604
        %v606 = vsub.f32 %v598, %v602
        %v607 = vsub.f32 %v599, %v605
        %v608 = vmul.f32 %v606, 1.442695
        %v609 = vpow.pop %v608
        %v610 = vmul.f32 %v607, 1.442695
        %v611 = vpow.pop %v610
        %v612 = vsel %vm207, %v609, 0.0
        %613 = vadd.xlane.f32.xlu0 %v612
        %v614 = vpop.xlane.xlu0 %613
        %v615 = vsel %vm207, %v611, 0.0
        %616 = vadd.xlane.f32.xlu0 %v615
        %v617 = vpop.xlane.xlu0 %616
        %v618 = vrcp.pop %v614
        %v619 = vrcp.pop %v617
        %v620 = vmul.f32 %v614, %v618
        %v621 = vmul.f32 %v617, %v619
        %v622 = vmul.f32 %v197, %v620
        %v623 = vmul.f32 %v198, %v621
        %624 = vset.pattern.permute.xlu0 6
        %625 = vperm.xlu0 %624, %v205
        %v626 = vpop.permute.xlu0 %625
        %628 = vset.pattern.permute.xlu0 6
        %629 = vperm.xlu0 %628, %v206
        %v630 = vpop.permute.xlu0 %629
        %v633 = vsel %vm207, %v203, 0
        %v636 = vsel %vm207, %v204, 0
        %638 = vmatprep.subr.mxu0 0.0
        %639 = vmatpush1.msra.mxu0 0.0
        %640 = vmatprep.subr.mxu0 0.0
        %641 = vmatpush1.msra.mxu0 0.0
        %642 = vmatprep.subr.mxu0 0.0
        %643 = vmatpush1.msra.mxu0 0.0
        %644 = vmatprep.subr.mxu0 0.0
        %645 = vmatpush1.msra.mxu0 0.0
        %646 = vmatprep.subr.mxu0 0.0
        %647 = vmatpush1.msra.mxu0 0.0
        %648 = vmatprep.subr.mxu0 0.0
        %649 = vmatpush1.msra.mxu0 0.0
        %650 = vmatprep.subr.mxu0 0.0
        %651 = vmatpush1.msra.mxu0 0.0
        %652 = vmatprep.subr.mxu0 0.0
        %653 = vmatpush1.msra.mxu0 0.0
        %654 = vmatprep.subr.mxu0 0.0
        %655 = vmatpush1.msra.mxu0 0.0
        %656 = vmatprep.subr.mxu0 0.0
        %657 = vmatpush1.msra.mxu0 0.0
        %658 = vmatprep.subr.mxu0 0.0
        %659 = vmatpush1.msra.mxu0 0.0
        %660 = vmatprep.subr.mxu0 0.0
        %661 = vmatpush1.msra.mxu0 0.0
        %662 = vmatprep.subr.mxu0 0.0
        %663 = vmatpush1.msra.mxu0 0.0
        %664 = vmatprep.subr.mxu0 0.0
        %665 = vmatpush1.msra.mxu0 0.0
        %666 = vmatprep.subr.mxu0 0.0
        %667 = vmatpush1.msra.mxu0 %v623
        %668 = vmatprep.subr.mxu0 0.0
        %669 = vmatpush1.msra.mxu0 %v622
        %670 = vmatprep.subr.mxu0 0.0
        %671 = vmatpush2.msra.mxu0 0.0
        %672 = vmatprep.subr.mxu0 0.0
        %673 = vmatpush2.msra.mxu0 0.0
        %674 = vmatprep.subr.mxu0 0.0
        %675 = vmatpush2.msra.mxu0 0.0
        %676 = vmatprep.subr.mxu0 0.0
        %677 = vmatpush2.msra.mxu0 0.0
        %678 = vmatprep.subr.mxu0 0.0
        %679 = vmatpush2.msra.mxu0 0.0
        %680 = vmatprep.subr.mxu0 0.0
        %681 = vmatpush2.msra.mxu0 0.0
        %682 = vmatprep.subr.mxu0 0.0
        %683 = vmatpush2.msra.mxu0 0.0
        %684 = vmatprep.subr.mxu0 0.0
        %685 = vmatpush2.msra.mxu0 0.0
        %686 = vmatprep.subr.mxu0 0.0
        %687 = vmatpush2.msra.mxu0 0.0
        %688 = vmatprep.subr.mxu0 0.0
        %689 = vmatpush2.msra.mxu0 0.0
        %690 = vmatprep.subr.mxu0 0.0
        %691 = vmatpush2.msra.mxu0 0.0
        %692 = vmatprep.subr.mxu0 0.0
        %693 = vmatpush2.msra.mxu0 0.0
        %694 = vmatprep.subr.mxu0 0.0
        %695 = vmatpush2.msra.mxu0 0.0
        %696 = vmatprep.subr.mxu0 0.0
        %697 = vmatpush2.msra.mxu0 0.0
        %698 = vmatprep.subr.mxu0 0.0
        %699 = vmatpush2.msra.mxu0 0.0
        %700 = vmatprep.subr.mxu0 0.0
        %701 = vmatpush2.msra.mxu0 0.0
        %702 = vmatprep.mubr.f32.mxu0 0.0
        %703 = vmatmul.mubr.f32.gmra.mxu0 %v633
        %v704 = vpop.f32.mrf.mxu0
        %v705 = vadd.f32 %v626, %v704
        %v706 = vpop.f32.mrf.mxu0
        %707 = vmatprep.mubr.f32.mxu0 0.0
        %708 = vmatmul.mubr.f32.gmra.mxu0 %v636
        %v709 = vpop.f32.mrf.mxu0
        %v710 = vadd.f32 %v630, %v709
        %v711 = vpop.f32.mrf.mxu0
        %712 = vdwg.mxu0
        %v713 = vsel %vm317, %v705, 0.0
        %v714 = vsel %vm317, %v710, 0.0
        %v715 = vadd.f32 %v713, %v714
        %v716 = vrot.slane %v715, 4
        %v717 = vadd.f32 %v715, %v716
        %v718 = vrot.slane %v717, 2
        %v719 = vadd.f32 %v717, %v718
        %v720 = vrot.slane %v719, 1
        %v721 = vadd.f32 %v719, %v720
        %v722 = vmul.f32 %v721, %v327
        %v723 = vsub.f32 %v705, %v722
        %v724 = vsub.f32 %v710, %v722
        %v725 = vmul.f32 %v723, %v723
        %v726 = vmul.f32 %v724, %v724
        %v727 = vsel %vm317, %v725, 0.0
        %v728 = vsel %vm317, %v726, 0.0
        %v729 = vadd.f32 %v727, %v728
        %v730 = vrot.slane %v729, 4
        %v731 = vadd.f32 %v729, %v730
        %v732 = vrot.slane %v731, 2
        %v733 = vadd.f32 %v731, %v732
        %v734 = vrot.slane %v733, 1
        %v735 = vadd.f32 %v733, %v734
        %v736 = vmul.f32 %v735, %v327
        %v737 = vadd.f32 %v736, 1e-05
        %v738 = vrsqrt.pop %v737
        %v739 = vmul.f32 %v723, %v738
        %v740 = vmul.f32 %v724, %v738
        %741 = vset.pattern.permute.xlu0 7
        %742 = vperm.xlu0 %741, %v205
        %v743 = vpop.permute.xlu0 %742
        %745 = vset.pattern.permute.xlu0 7
        %746 = vperm.xlu0 %745, %v206
        %v747 = vpop.permute.xlu0 %746
        %v749 = vmul.f32 %v739, %v743
        %v750 = vmul.f32 %v740, %v747
        %751 = vset.pattern.permute.xlu0 8
        %752 = vperm.xlu0 %751, %v205
        %v753 = vpop.permute.xlu0 %752
        %755 = vset.pattern.permute.xlu0 8
        %756 = vperm.xlu0 %755, %v206
        %v757 = vpop.permute.xlu0 %756
        %v759 = vadd.f32 %v749, %v753
        %v760 = vadd.f32 %v750, %v757
        %761 = vst.msk [vmem:[%s190] sm:$0xff] %vm317, %v759
        %762 = vst.msk [vmem:[%s190 + $0x8] sm:$0xff] %vm317, %v760
        %s763 = sand.u32 %s115, 1
        %s764 = scalar_lea.sflag [#allocation3], %s763
        %s765 = sand.u32 %s115, 1
        %s766 = smul.addr %s765, 16
        %s767 = scalar_lea.vmem [#allocation2], %s766
        // Predicated region
        $region37: #{tpu_custom_call.1} parent=35 // pred_check
          %p768 = pneg %p125
        $region38: #{tpu_custom_call.1} parent=35 // pred_check_branch
          %770 = sbr.rel (%p768) target = $region40
        $region39: #{tpu_custom_call.1} parent=35 // pred_region
          %s772 = ssub.s32 256, 256
          %773 = vsyncadd %s764, %s772
          %s774 = smul.addr %s18, 2
          %s775 = smul.addr %s774, 128
          %s776 = scalar_lea.hbm %s4, %s775
          %s777 = sshll.u32 %s767, 4
          %s778 = int_to_ptr.vmem [resolvable:$true] %s777
          %783 = dma.vmem_to_hbm [thread:$0]  %s778, 256, %s776, %s764, 128, 128, 8
        $region40: #{tpu_custom_call.1} parent=35 // pred_fallthru
          _
      $region36: #{tpu_custom_call.1} parent=5 // pred_fallthru
        _
      %p784 = scmp.le.s32.totalorder 2, %s13
      // Predicated region
      $region41: #{tpu_custom_call.1} parent=5 // pred_check
        %p785 = pneg %p784
      $region42: #{tpu_custom_call.1} parent=5 // pred_check_branch
        %787 = sbr.rel (%p785) target = $region44
      $region43: #{tpu_custom_call.1} parent=5 // pred_region
        %s788 = ssub.s32 %s13, 2
        // Predicated region
        $region45: #{tpu_custom_call.1} parent=43 // pred_check
          %p789 = pneg %p131
        $region46: #{tpu_custom_call.1} parent=43 // pred_check_branch
          %791 = sbr.rel (%p789) target = $region48
        $region47: #{tpu_custom_call.1} parent=43 // pred_region
          %s792 = sand.u32 %s116, 1
          %s793 = scalar_lea.sflag [#allocation3], %s792
          %s794 = sand.u32 %s116, 1
          %s795 = smul.addr %s794, 16
          %s796 = scalar_lea.vmem [#allocation2], %s795
          %797 = dma.done %s793, 256
        $region48: #{tpu_custom_call.1} parent=43 // pred_fallthru
          _
      $region44: #{tpu_custom_call.1} parent=5 // pred_fallthru
        _
    $region6: #{tpu_custom_call.1} parent=1 // loop_footer
      %s17 = sadd.s32 1, %s13
    $region7: #{tpu_custom_call.1} parent=1 // loop_footer_branch
      %12 = sbr.rel target = $region3
    $region8: #{tpu_custom_call.1} parent=1 // loop_exit
      _
    %798 = vsyncpa [#allocation3], 1
    %s799 = scalar_lea.sflag [#allocation3], 1
    %800 = vsyncpa %s799, 1

</llo_original>
